<compile_context>
chip_gen: v6e
topology: v6e:2x2x1
jax: 0.10.0
libtpu: 0.0.40
codegen_flags: <defaults>
</compile_context>

<pallas_src>
import jax
import jax.numpy as jnp
from jax.experimental import pallas as pl
from jax.experimental.pallas import tpu as pltpu


# ----------------------------------------------------------------------------
# Kernel bodies: plain full-tile copies (the permutation is in the index_maps).
# ----------------------------------------------------------------------------
def _shuffle_copy_dense(x_ref, o_ref):
    # x_ref block: (tn, 1, tcpg, thw)   -- slab of input channel-group g
    # o_ref block: (tn, tcpg, thw)      -- dense (sublane, lane) output tile;
    #                                      output DMA scatters it to channels
    #                                      cp*G + g via the 3-D output view.
    o_ref[...] = x_ref[:, 0, :, :]


def _shuffle_copy_grouped(x_ref, o_ref):
    # Fallback layout (g > 1 and H*W not a multiple of 128).
    # x_ref block: (tn, 1, tcpg, thw) ; o_ref block: (tn, tcpg, 1, thw)
    o_ref[:, :, 0, :] = x_ref[:, 0, :, :]


# ----------------------------------------------------------------------------
# Tiling / VMEM sizing helpers.
# ----------------------------------------------------------------------------
def _vmem_budget():
    """Returns (per-step tile budget bytes, vmem_limit_bytes) per generation."""
    cap = None
    try:
        cap = pltpu.get_tpu_info().vmem_capacity_bytes
    except Exception:
        cap = None
    if cap is not None and cap >= 100 * 1024 * 1024:
        # v5e / v6e: 128 MiB physical VMEM -> bigger tiles, fewer grid steps.
        return 20 * 1024 * 1024, 80 * 1024 * 1024
    # v7x (64 MiB VMEM) or unknown: leave generous headroom.
    return 10 * 1024 * 1024, 48 * 1024 * 1024


def _choose_tiles(n, cpg, hw, itemsize, budget_bytes, need_hw_divisor):
    """Pick (tn, tcpg, thw).

    Preference order: full H*W per step (long contiguous HBM runs), then tile
    C/G in sublane-pack multiples, then widen across the batch to amortize the
    fixed per-grid-step overhead.  `budget_bytes` bounds the double-buffered
    (input + output) VMEM footprint of one step, including layout padding.
    """
    pack = max(8, 32 // itemsize)   # sublane packing: 8 f32 / 16 bf16 / 32 i8
    lane = 128

    def rup(x, m):
        return -(-x // m) * m

    def step_bytes(tn, tc, th):
        # in tile + out tile, double buffered, sublane/lane padded.
        return 4 * tn * rup(tc, pack) * rup(th, lane) * itemsize

    # 1) H*W tile: keep the full extent unless even a single pack-row slab
    #    overflows the budget.
    thw = hw
    if step_bytes(1, min(cpg, pack), hw) > budget_bytes:
        cap = budget_bytes // (4 * rup(min(cpg, pack), pack) * itemsize)
        cap = max(lane, (cap // lane) * lane)
        if need_hw_divisor:
            # dense-output path with g > 1: thw must divide hw (hw % 128 == 0
            # here, so a 128-multiple divisor always exists).
            thw = lane
            t = min(cap, (hw // lane) * lane)
            while t >= lane:
                if hw % t == 0:
                    thw = t
                    break
                t -= lane
        else:
            thw = min(cap, hw)
            if thw < hw:
                thw = max(lane, (thw // lane) * lane)

    # 2) C/G tile: largest sublane-pack multiple that fits the budget.
    tcpg = cpg
    if step_bytes(1, cpg, thw) > budget_bytes:
        cap = budget_bytes // (4 * rup(thw, lane) * itemsize)
        tcpg = min(cpg, max(pack, (cap // pack) * pack))

    # 3) Batch tile: widen across N to fill the budget / amortize overhead.
    per = step_bytes(1, tcpg, thw)
    tn = int(max(1, min(n, budget_bytes // max(1, per))))

    return tn, tcpg, thw


# ----------------------------------------------------------------------------
# Forward wrapper (matches PyTorch ChannelShuffle.forward on NCHW input).
# ----------------------------------------------------------------------------
def channel_shuffle_forward(x_nchw, groups):
    n, c, h, w = x_nchw.shape
    if c % groups != 0:
        raise ValueError("channels must be divisible by groups")
    g = groups
    cpg = c // g
    hw = h * w
    itemsize = jnp.dtype(x_nchw.dtype).itemsize

    budget_bytes, vmem_limit = _vmem_budget()

    # Free row-major view of the input: (N, G, C/G, H*W).
    x4 = x_nchw.reshape(n, g, cpg, hw)

    # Dense-output path is legal whenever the per-group H*W slab starts at a
    # 128-aligned lane offset inside the flattened (G*H*W) output axis.
    dense_out = (g == 1) or (hw % 128 == 0)

    tn, tcpg, thw = _choose_tiles(
        n, cpg, hw, itemsize, budget_bytes,
        need_hw_divisor=(dense_out and g > 1))

    n_bt = pl.cdiv(n, tn)
    c_bt = pl.cdiv(cpg, tcpg)
    h_bt = pl.cdiv(hw, thw)
    grid = (n_bt, g, c_bt, h_bt)

    in_spec = pl.BlockSpec((tn, 1, tcpg, thw),
                           lambda ni, gi, ci, ti: (ni, gi, ci, ti))

    cost = pl.CostEstimate(flops=0, transcendentals=0,
                           bytes_accessed=2 * x_nchw.size * itemsize)
    cparams = pltpu.CompilerParams(
        dimension_semantics=("parallel", "parallel", "parallel", "parallel"),
        vmem_limit_bytes=vmem_limit)

    if dense_out:
        # Output viewed as (N, C/G, G*H*W): block (tn, tcpg, thw) is
        # sublane/lane dense; block index along the last axis places the slab
        # at element offset g*hw + ti*thw.
        n_hw_blocks = h_bt
        out_spec = pl.BlockSpec(
            (tn, tcpg, thw),
            lambda ni, gi, ci, ti: (ni, ci, gi * n_hw_blocks + ti))
        out3 = pl.pallas_call(
            _shuffle_copy_dense,
            out_shape=jax.ShapeDtypeStruct((n, cpg, g * hw), x_nchw.dtype),
            grid=grid,
            in_specs=[in_spec],
            out_specs=out_spec,
            compiler_params=cparams,
            cost_estimate=cost,
        )(x4)
        # (n, cpg, g*hw) row-major == (n, cpg, g, hw) row-major; flattening
        # (cpg, g) gives exactly the shuffled channel order cp*G + g.
        return out3.reshape(n, c, h, w)

    # Fallback: 4-D output view (N, C/G, G, H*W); kept only for g > 1 with
    # H*W not a multiple of 128 (sub-dense output tiles, masked stores).
    out_spec = pl.BlockSpec((tn, tcpg, 1, thw),
                            lambda ni, gi, ci, ti: (ni, ci, gi, ti))
    out4 = pl.pallas_call(
        _shuffle_copy_grouped,
        out_shape=jax.ShapeDtypeStruct((n, cpg, g, hw), x_nchw.dtype),
        grid=grid,
        in_specs=[in_spec],
        out_specs=out_spec,
        compiler_params=cparams,
        cost_estimate=cost,
    )(x4)
    return out4.reshape(n, c, h, w)


if __name__ == "__main__":
    key = jax.random.PRNGKey(0)
    N, C, H, W = 2, 4, 16, 16
    GROUPS = 2

    x = jax.random.normal(key, (N, C, H, W), dtype=jnp.float32)

    out = jax.block_until_ready(channel_shuffle_forward(x, GROUPS))

    # Pure-JAX reference (identical semantics to the PyTorch module).
    ref = (x.reshape(N, GROUPS, C // GROUPS, H, W)
             .transpose(0, 2, 1, 3, 4)
             .reshape(N, C, H, W))

    assert out.shape == (N, C, H, W), out.shape
    assert jnp.array_equal(out, ref), float(jnp.max(jnp.abs(out - ref)))
    print("KERNEL_OK")
</pallas_src>

<mosaic_0001>
module attributes {stable_mosaic.version = 11 : i64} {
  func.func @_shuffle_copy_dense(%arg0: i32, %arg1: i32, %arg2: i32, %arg3: i32, %arg4: memref<2x1x2x256xf32, #tpu.memory_space<vmem>>, %arg5: memref<2x2x256xf32, #tpu.memory_space<vmem>>) attributes {dimension_semantics = [#tpu.dimension_semantics<parallel>, #tpu.dimension_semantics<parallel>, #tpu.dimension_semantics<parallel>, #tpu.dimension_semantics<parallel>], iteration_bounds = array<i64: 1, 2, 1, 1>, scalar_prefetch = 0 : i64, scratch_operands = 0 : i64, tpu.core_type = #tpu.core_type<tc>, window_params = [{transform_indices = @transform_0, window_bounds = array<i64: 2, 1, 2, 256>}, {transform_indices = @transform_1, window_bounds = array<i64: 2, 2, 256>}]} {
    %c0 = arith.constant 0 : index
    %c0_0 = arith.constant 0 : index
    %c0_1 = arith.constant 0 : index
    %c0_2 = arith.constant 0 : index
    %0 = vector.load %arg4[%c0, %c0_0, %c0_1, %c0_2] : memref<2x1x2x256xf32, #tpu.memory_space<vmem>>, vector<2x1x2x256xf32>
    %1 = vector.shape_cast %0 : vector<2x1x2x256xf32> to vector<2x2x256xf32>
    %c0_3 = arith.constant 0 : index
    %c0_4 = arith.constant 0 : index
    %c0_5 = arith.constant 0 : index
    %2 = vector.load %arg5[%c0_3, %c0_4, %c0_5] : memref<2x2x256xf32, #tpu.memory_space<vmem>>, vector<2x2x256xf32>
    tpu.vector_store %arg5[%c0_3, %c0_4, %c0_5], %1 {strides = array<i32>} : memref<2x2x256xf32, #tpu.memory_space<vmem>>, vector<2x2x256xf32>,
    return
  }
  func.func @transform_0(%arg0: i32, %arg1: i32, %arg2: i32, %arg3: i32) -> (i32, i32, i32, i32) {
    %c0_i32 = arith.constant 0 : i32
    return %arg0, %arg1, %arg2, %arg3 : i32, i32, i32, i32
  }
  func.func @transform_1(%arg0: i32, %arg1: i32, %arg2: i32, %arg3: i32) -> (i32, i32, i32) {
    %c1_i32 = arith.constant 1 : i32
    %0 = arith.muli %arg1, %c1_i32 : i32
    %1 = arith.addi %0, %arg3 : i32
    %c0_i32 = arith.constant 0 : i32
    return %arg0, %arg2, %1 : i32, i32, i32
  }
}

</mosaic_0001>

<llo_original>
// kernel: tpu_custom_call.1
$region0: #{tpu_custom_call.1}
  #allocation0 [shape = 'u32[]', space=smem, size = 0x4, offset = 0x4, fixed_abs, tag = 'smem constant byte address 0x4 - core index']
  #allocation1 [shape = 'u32[144,128]{1,0:T(1,128)}', space=vmem, size = 0x12000, scoped, tag = 'internal scratch']
  %s0 = inlined_call_operand.hbm [shape: f32[2,2,2,256], index: 0, kind: input, shape index: {}]
  %s1 = inlined_call_operand.hbm [shape: f32[2,2,512], index: 1, kind: output, shape index: {}]
  %s2 = sld [smem:[#allocation0]]
  $region41: #{tpu_custom_call.1} parent=0
    _
  %s4 = ssub.s32 1, %s2
  %s5 = scalar_select 0, %s4, %s2
  $region1: #{tpu_custom_call.1} parent=0
    #allocation2 [shape = 'u8[8192]{0}', space=vmem, size = 0x2000, scoped, tag = 'input window, operand 0']
    #allocation3 [shape = 's32[2]{0}', space=sflag, size = 0x8, scoped, tag = 'scoped memory for tpu_custom_call.1']
    #allocation4 [shape = 's32[2]{0}', space=sflag, size = 0x8, scoped, tag = 'scoped memory for tpu_custom_call.1']
    #allocation5 [shape = 'u8[8192]{0}', space=vmem, size = 0x2000, scoped, tag = 'output window, operand 0']
    %6 = vsyncpa [#allocation3], 0
    %s7 = scalar_lea.sflag [#allocation3], 1
    %8 = vsyncpa %s7, 0
    %9 = vsyncpa [#allocation4], 0
    %s10 = scalar_lea.sflag [#allocation4], 1
    %11 = vsyncpa %s10, 0
    loop: start=0, step=1, limit=4
    $region2: #{tpu_custom_call.1} parent=1 // loop_pre_header
      _
    $region3: #{tpu_custom_call.1} parent=1 // loop_header
      %s13 = sphi 0, %s17
      %p14 = scmp.ge.s32.totalorder %s13, 4
      %s20 = sphi 0, %s46
      %s21 = sphi 0, %s42
      %s22 = sphi 0, %s38
      %s23 = sphi 0, %s34
      %s24 = sphi 0, %s20
      %s25 = sphi 0, %s21
      %s26 = sphi 0, %s22
      %s27 = sphi 0, %s23
      %s28 = sphi 0, %s24
      %s29 = sphi 0, %s25
      %s30 = sphi 0, %s26
      %s31 = sphi 0, %s27
      %s55 = sphi 0, %s57
      %s58 = sphi 0, %s55
      %s59 = sphi 0, %s58
      %s75 = sphi 0, %s59
      %s87 = sphi 0, %s89
      %s90 = sphi 0, %s87
      %s91 = sphi 0, %s90
      %s107 = sphi 0, %s91
    $region4: #{tpu_custom_call.1} parent=1 // loop_header_branch
      %16 = sbr.rel (%p14) target = $region8
    $region5: #{tpu_custom_call.1} parent=1 // loop_body
      %s18 = ssub.s32 %s13, 1
      %s19 = ssub.s32 %s13, 2
      %s32 = sadd.s32 1, %s23
      %p33 = scmp.ge.s32.totalorder %s32, 1
      %s34 = scalar_select %p33, 0, %s32
      %s35 = sadd.s32 1, %s22
      %s36 = scalar_select %p33, %s35, %s22
      %p37 = scmp.ge.s32.totalorder %s36, 1
      %s38 = scalar_select %p37, 0, %s36
      %s39 = sadd.s32 1, %s21
      %s40 = scalar_select %p37, %s39, %s21
      %p41 = scmp.ge.s32.totalorder %s40, 2
      %s42 = scalar_select %p41, 0, %s40
      %s43 = sadd.s32 1, %s20
      %s44 = scalar_select %p41, %s43, %s20
      %p45 = scmp.ge.s32.totalorder %s44, 1
      %s46 = scalar_select %p45, 0, %s44
      %s47 = ssub.s32 %s20, %s46
      %s48 = ssub.s32 %s21, %s42
      %s49 = sor.u32 %s47, %s48
      %s50 = ssub.s32 %s22, %s38
      %s51 = sor.u32 %s49, %s50
      %s52 = ssub.s32 %s23, %s34
      %s53 = sor.u32 %s51, %s52
      %p54 = scmp.eq.s32.totalorder %s53, 0
      %s56 = sadd.s32 %s55, 1
      %s57 = scalar_select %p54, %s55, %s56
      %p60 = pneg %p54
      %p61 = scmp.eq.s32.totalorder %s13, 1
      %p62 = por %p60, %p61
      %p63 = scmp.ne.s32.totalorder %s55, %s58
      %p64 = scmp.eq.s32.totalorder %s13, 0
      %p65 = por %p63, %p64
      %p66 = scmp.ne.s32.totalorder %s55, %s58
      %p67 = scmp.eq.s32.totalorder %s18, 1
      %p68 = por %p66, %p67
      %p69 = scmp.ne.s32.totalorder %s58, %s59
      %p70 = scmp.eq.s32.totalorder %s18, 0
      %p71 = por %p69, %p70
      %p72 = scmp.ne.s32.totalorder %s58, %s59
      %p73 = scmp.eq.s32.totalorder %s19, 1
      %p74 = por %p72, %p73
      %p76 = scmp.ne.s32.totalorder %s59, %s75
      %p77 = scmp.eq.s32.totalorder %s19, 0
      %p78 = por %p76, %p77
      %s79 = sadd.s32 %s21, %s23
      %s80 = sadd.s32 %s42, %s34
      %s81 = ssub.s32 %s20, %s46
      %s82 = ssub.s32 %s22, %s38
      %s83 = sor.u32 %s81, %s82
      %s84 = ssub.s32 %s79, %s80
      %s85 = sor.u32 %s83, %s84
      %p86 = scmp.eq.s32.totalorder %s85, 0
      %s88 = sadd.s32 %s87, 1
      %s89 = scalar_select %p86, %s87, %s88
      %p92 = pneg %p86
      %p93 = scmp.eq.s32.totalorder %s13, 1
      %p94 = por %p92, %p93
      %p95 = scmp.ne.s32.totalorder %s87, %s90
      %p96 = scmp.eq.s32.totalorder %s13, 0
      %p97 = por %p95, %p96
      %p98 = scmp.ne.s32.totalorder %s87, %s90
      %p99 = scmp.eq.s32.totalorder %s18, 1
      %p100 = por %p98, %p99
      %p101 = scmp.ne.s32.totalorder %s90, %s91
      %p102 = scmp.eq.s32.totalorder %s18, 0
      %p103 = por %p101, %p102
      %p104 = scmp.ne.s32.totalorder %s90, %s91
      %p105 = scmp.eq.s32.totalorder %s19, 1
      %p106 = por %p104, %p105
      %p108 = scmp.ne.s32.totalorder %s91, %s107
      %p109 = scmp.eq.s32.totalorder %s19, 0
      %p110 = por %p108, %p109
      %p111 = scmp.le.s32.totalorder 1, %s13
      %p112 = scmp.lt.s32.totalorder %s13, 3
      %p113 = pnand %p111, %p112
      %p114 = pneg %p113
      // Predicated region
      $region9: #{tpu_custom_call.1} parent=5 // pred_check
        _
      $region10: #{tpu_custom_call.1} parent=5 // pred_check_branch
        %116 = sbr.rel (%p113) target = $region12
      $region11: #{tpu_custom_call.1} parent=5 // pred_region
        %s117 = ssub.s32 %s13, 1
      $region12: #{tpu_custom_call.1} parent=5 // pred_fallthru
        _
      %p118 = scmp.lt.s32.totalorder %s13, 2
      // Predicated region
      $region13: #{tpu_custom_call.1} parent=5 // pred_check
        %p119 = pneg %p118
      $region14: #{tpu_custom_call.1} parent=5 // pred_check_branch
        %121 = sbr.rel (%p119) target = $region16
      $region15: #{tpu_custom_call.1} parent=5 // pred_region
        // Predicated region
        $region17: #{tpu_custom_call.1} parent=15 // pred_check
          %p122 = pneg %p65
        $region18: #{tpu_custom_call.1} parent=15 // pred_check_branch
          %124 = sbr.rel (%p122) target = $region20
        $region19: #{tpu_custom_call.1} parent=15 // pred_region
          %s125 = sand.u32 %s55, 1
          %s126 = scalar_lea.sflag [#allocation3], %s125
          %s127 = sand.u32 %s55, 1
          %s128 = smul.addr %s127, 8
          %s129 = scalar_lea.vmem [#allocation2], %s128
          %s130 = smul.u32 2, %s20
          %s131 = smul.u32 2, %s23
          %s133 = ssub.s32 128, 128
          %134 = vsyncadd %s126, %s133
          %s135 = smul.addr %s22, 2
          %s136 = sadd.s32 %s131, %s135
          %s137 = smul.addr %s21, 2
          %s138 = sadd.s32 %s136, %s137
          %s139 = smul.addr %s130, 4
          %s140 = sadd.s32 %s138, %s139
          %s141 = smul.addr %s140, 32
          %s142 = scalar_lea.hbm %s0, %s141
          %s143 = sshll.u32 %s129, 4
          %s144 = int_to_ptr.vmem [resolvable:$true] %s143
          %149 = dma.hbm_to_vmem [thread:$0]  %s142, 128, %s144, %s126, 128, 64, 4
        $region20: #{tpu_custom_call.1} parent=15 // pred_fallthru
          _
      $region16: #{tpu_custom_call.1} parent=5 // pred_fallthru
        _
      %p150 = scmp.le.s32.totalorder 1, %s13
      %p151 = scmp.lt.s32.totalorder %s13, 3
      %p152 = pnand %p150, %p151
      %p153 = pneg %p152
      // Predicated region
      $region21: #{tpu_custom_call.1} parent=5 // pred_check
        _
      $region22: #{tpu_custom_call.1} parent=5 // pred_check_branch
        %155 = sbr.rel (%p152) target = $region24
      $region23: #{tpu_custom_call.1} parent=5 // pred_region
        %s156 = ssub.s32 %s13, 1
        %s157 = sand.u32 %s58, 1
        %s158 = scalar_lea.sflag [#allocation3], %s157
        %s159 = sand.u32 %s58, 1
        %s160 = smul.addr %s159, 8
        %s161 = scalar_lea.vmem [#allocation2], %s160
        // Predicated region
        $region25: #{tpu_custom_call.1} parent=23 // pred_check
          %p162 = pneg %p71
        $region26: #{tpu_custom_call.1} parent=23 // pred_check_branch
          %164 = sbr.rel (%p162) target = $region28
        $region27: #{tpu_custom_call.1} parent=23 // pred_region
          %165 = dma.done %s158, 128
        $region28: #{tpu_custom_call.1} parent=23 // pred_fallthru
          _
        %s166 = sand.u32 %s58, 1
        %s167 = scalar_lea.sflag [#allocation3], %s166
        %s168 = sand.u32 %s58, 1
        %s169 = smul.addr %s168, 8
        %s170 = scalar_lea.vmem [#allocation2], %s169
        %p171 = pneg %p71
        %p172 = pneg %p68
        %p173 = pneg %p103
        %p174 = pneg %p100
        %s175 = sand.u32 %s90, 1
        %s176 = scalar_lea.sflag [#allocation4], %s175
        %s177 = sand.u32 %s90, 1
        %s178 = smul.addr %s177, 8
        %s179 = scalar_lea.vmem [#allocation5], %s178
        %s180 = smul.u32 2, %s24
        %s181 = smul.u32 2, %s27
        %s182 = sadd.s32 %s25, %s27
        %s183 = smul.u32 2, %s24
        %s184 = smul.u32 2, %s182
        %v185 = vld [vmem:[%s161] sm:$0xf]
        %v186 = vld [vmem:[%s161 + $0x4] sm:$0xf]
        %187 = vst [vmem:[%s179] sm:$0xf] %v185
        %188 = vst [vmem:[%s179 + $0x4] sm:$0xf] %v186
        %s189 = sand.u32 %s90, 1
        %s190 = scalar_lea.sflag [#allocation4], %s189
        %s191 = sand.u32 %s90, 1
        %s192 = smul.addr %s191, 8
        %s193 = scalar_lea.vmem [#allocation5], %s192
        // Predicated region
        $region29: #{tpu_custom_call.1} parent=23 // pred_check
          %p194 = pneg %p100
        $region30: #{tpu_custom_call.1} parent=23 // pred_check_branch
          %196 = sbr.rel (%p194) target = $region32
        $region31: #{tpu_custom_call.1} parent=23 // pred_region
          %s197 = sadd.s32 %s25, %s27
          %s198 = smul.u32 2, %s24
          %s199 = smul.u32 2, %s197
          %s201 = ssub.s32 128, 128
          %202 = vsyncadd %s190, %s201
          %s203 = smul.addr %s26, 4
          %s204 = sadd.s32 %s199, %s203
          %s205 = smul.addr %s198, 4
          %s206 = sadd.s32 %s204, %s205
          %s207 = smul.addr %s206, 32
          %s208 = scalar_lea.hbm %s1, %s207
          %s209 = sshll.u32 %s193, 4
          %s210 = int_to_ptr.vmem [resolvable:$true] %s209
          %215 = dma.vmem_to_hbm [thread:$0]  %s210, 128, %s208, %s190, 64, 128, 4
        $region32: #{tpu_custom_call.1} parent=23 // pred_fallthru
          _
      $region24: #{tpu_custom_call.1} parent=5 // pred_fallthru
        _
      %p216 = scmp.le.s32.totalorder 2, %s13
      // Predicated region
      $region33: #{tpu_custom_call.1} parent=5 // pred_check
        %p217 = pneg %p216
      $region34: #{tpu_custom_call.1} parent=5 // pred_check_branch
        %219 = sbr.rel (%p217) target = $region36
      $region35: #{tpu_custom_call.1} parent=5 // pred_region
        %s220 = ssub.s32 %s13, 2
        // Predicated region
        $region37: #{tpu_custom_call.1} parent=35 // pred_check
          %p221 = pneg %p106
        $region38: #{tpu_custom_call.1} parent=35 // pred_check_branch
          %223 = sbr.rel (%p221) target = $region40
        $region39: #{tpu_custom_call.1} parent=35 // pred_region
          %s224 = sand.u32 %s91, 1
          %s225 = scalar_lea.sflag [#allocation4], %s224
          %s226 = sand.u32 %s91, 1
          %s227 = smul.addr %s226, 8
          %s228 = scalar_lea.vmem [#allocation5], %s227
          %229 = dma.done %s225, 128
        $region40: #{tpu_custom_call.1} parent=35 // pred_fallthru
          _
      $region36: #{tpu_custom_call.1} parent=5 // pred_fallthru
        _
    $region6: #{tpu_custom_call.1} parent=1 // loop_footer
      %s17 = sadd.s32 1, %s13
    $region7: #{tpu_custom_call.1} parent=1 // loop_footer_branch
      %12 = sbr.rel target = $region3
    $region8: #{tpu_custom_call.1} parent=1 // loop_exit
      _
    %230 = vsyncpa [#allocation3], 1
    %s231 = scalar_lea.sflag [#allocation3], 1
    %232 = vsyncpa %s231, 1
    %233 = vsyncpa [#allocation4], 1
    %s234 = scalar_lea.sflag [#allocation4], 1
    %235 = vsyncpa %s234, 1

</llo_original>
